<compile_context>
chip_gen: v7x
topology: tpu7x:2x2x1
jax: 0.10.0
libtpu: 0.0.40
codegen_flags: <defaults>
</compile_context>

<pallas_src>
import jax
import jax.numpy as jnp
from jax.experimental import pallas as pl
from jax.experimental.pallas import tpu as pltpu

LANE = 128          # vreg lane width: hidden dim padded to this
ROW_BUCKET = 256    # batch bucketing granularity (avoids per-n recompiles)
MAX_BLOCK_ROWS = 1024  # large-batch tile (measured ~86% HBM roofline)


def _round_up(x, m):
    return ((x + m - 1) // m) * m


def decoder_kernel(z_ref, w1_ref, b1_ref, w2_ref, b2_ref, w3_ref, b3_ref,
                   out_ref):
    # Fused Linear -> tanh -> Linear -> tanh -> Linear on one batch tile.
    # z_ref: (rows, latent_dim)  w1: (latent_dim, 128)  w2: (128, 128)
    # w3: (128, output_dim)      out_ref: (rows, output_dim)
    h = jnp.dot(z_ref[...], w1_ref[...],
                preferred_element_type=jnp.float32) + b1_ref[...]
    h = jnp.tanh(h)
    h = jnp.dot(h, w2_ref[...],
                preferred_element_type=jnp.float32) + b2_ref[...]
    h = jnp.tanh(h)
    o = jnp.dot(h, w3_ref[...],
                preferred_element_type=jnp.float32) + b3_ref[...]
    out_ref[...] = o.astype(out_ref.dtype)


def prepare_decoder_params(w1, b1, w2, b2, w3, b3):
    """One-time (outside the per-call path): pad the hidden dim to 128 lanes.

    The latent (K of layer 1) and output (N of layer 3) dims stay unpadded so
    the activation HBM traffic is exactly the real data.
    """
    latent_dim, hidden_dim = w1.shape
    output_dim = w3.shape[1]
    hid_p = _round_up(hidden_dim, LANE)

    f32 = jnp.float32
    w1p = jnp.zeros((latent_dim, hid_p), f32).at[:, :hidden_dim].set(w1)
    b1p = jnp.zeros((1, hid_p), f32).at[:, :hidden_dim].set(b1)
    w2p = jnp.zeros((hid_p, hid_p), f32).at[:hidden_dim, :hidden_dim].set(w2)
    b2p = jnp.zeros((1, hid_p), f32).at[:, :hidden_dim].set(b2)
    w3p = jnp.zeros((hid_p, output_dim), f32).at[:hidden_dim, :].set(w3)
    b3p = jnp.asarray(b3, f32).reshape(1, output_dim)
    return w1p, b1p, w2p, b2p, w3p, b3p


@jax.jit
def decoder_subnet_forward(z, w1p, b1p, w2p, b2p, w3p, b3p):
    """Fused decoder forward. Expects pre-padded params from
    prepare_decoder_params; z is (n, latent_dim) f32."""
    n, latent_dim = z.shape
    hid_p = w1p.shape[1]
    output_dim = w3p.shape[1]

    # --- batch tiling (trace-time Python; stable per 256-row bucket) ------
    n_pad = _round_up(max(n, 1), ROW_BUCKET)
    if n_pad <= ROW_BUCKET:
        block_rows = n_pad                      # single grid step
    elif n_pad <= 2 * MAX_BLOCK_ROWS:
        block_rows = n_pad // 2                 # 2 balanced tiles (v7x: 2 TCs)
    else:
        n_pad = _round_up(n_pad, MAX_BLOCK_ROWS)
        block_rows = MAX_BLOCK_ROWS             # 1024-row tiles for large n
    grid = (n_pad // block_rows,)

    # Only batch-row padding; no feature-lane padding of z.
    zp = jnp.zeros((n_pad, latent_dim), jnp.float32).at[:n].set(
        z.astype(jnp.float32))

    in_specs = [
        pl.BlockSpec((block_rows, latent_dim), lambda i: (i, 0)),  # z tile
        pl.BlockSpec((latent_dim, hid_p), lambda i: (0, 0)),       # w1
        pl.BlockSpec((1, hid_p), lambda i: (0, 0)),                # b1
        pl.BlockSpec((hid_p, hid_p), lambda i: (0, 0)),            # w2
        pl.BlockSpec((1, hid_p), lambda i: (0, 0)),                # b2
        pl.BlockSpec((hid_p, output_dim), lambda i: (0, 0)),       # w3
        pl.BlockSpec((1, output_dim), lambda i: (0, 0)),           # b3
    ]
    out_specs = pl.BlockSpec((block_rows, output_dim), lambda i: (i, 0))

    # Advisory cost matching the actual HBM layout / in-kernel math.
    flops = 2 * n_pad * (latent_dim * hid_p + hid_p * hid_p
                         + hid_p * output_dim)
    transcendentals = 2 * n_pad * hid_p
    bytes_accessed = 4 * (n_pad * latent_dim + n_pad * output_dim
                          + latent_dim * hid_p + hid_p * hid_p
                          + hid_p * output_dim + 2 * hid_p + output_dim)

    out_pad = pl.pallas_call(
        decoder_kernel,
        out_shape=jax.ShapeDtypeStruct((n_pad, output_dim), jnp.float32),
        grid_spec=pl.GridSpec(grid=grid, in_specs=in_specs,
                              out_specs=out_specs),
        compiler_params=pltpu.CompilerParams(
            dimension_semantics=("parallel",)),
        cost_estimate=pl.CostEstimate(flops=flops,
                                      transcendentals=transcendentals,
                                      bytes_accessed=bytes_accessed),
    )(zp, w1p, b1p, w2p, b2p, w3p, b3p)

    # Strip batch-row padding only (output is already lane-exact).
    return out_pad[:n, :]


def init_decoder_params(key, latent_dim, hidden_dim, output_dim):
    """Deterministic synthetic parameters (shapes match the nn.Linear layers)."""
    ks = jax.random.split(key, 6)

    def linear(kw, kb, fan_in, fan_out):
        bound = 1.0 / jnp.sqrt(jnp.float32(fan_in))
        w = jax.random.uniform(kw, (fan_in, fan_out), jnp.float32,
                               minval=-bound, maxval=bound)
        b = jax.random.uniform(kb, (1, fan_out), jnp.float32,
                               minval=-bound, maxval=bound)
        return w, b

    w1, b1 = linear(ks[0], ks[1], latent_dim, hidden_dim)
    w2, b2 = linear(ks[2], ks[3], hidden_dim, hidden_dim)
    w3, b3 = linear(ks[4], ks[5], hidden_dim, output_dim)
    return w1, b1, w2, b2, w3, b3


def reference_forward(z, w1, b1, w2, b2, w3, b3):
    h = jnp.tanh(z @ w1 + b1)
    h = jnp.tanh(h @ w2 + b2)
    return h @ w3 + b3


if __name__ == "__main__":
    # Shapes consistent with the module: latent_dim=15, hidden_dim=26
    # (first subnet), output_dim = input_dim of that subnet (pick 10).
    latent_dim = 15
    hidden_dim = 26
    output_dim = 10
    num_samples = 16

    key = jax.random.PRNGKey(0)
    kz, kp = jax.random.split(key)
    z = jax.random.normal(kz, (num_samples, latent_dim), dtype=jnp.float32)
    params = init_decoder_params(kp, latent_dim, hidden_dim, output_dim)

    # One-time padding/prepare step (outside the per-call jitted path).
    prepared = prepare_decoder_params(*params)
    prepared = jax.block_until_ready(prepared)

    # Small batch (single grid step).
    x_hat = jax.block_until_ready(decoder_subnet_forward(z, *prepared))
    ref = reference_forward(z, *params)
    assert x_hat.shape == (num_samples, output_dim)
    assert jnp.allclose(x_hat, ref, atol=1e-5, rtol=1e-5)

    # Ragged batch (not a multiple of 8): handled by wrapper-side row padding.
    z_ragged = z[:13]
    x_hat_r = jax.block_until_ready(decoder_subnet_forward(z_ragged, *prepared))
    ref_r = reference_forward(z_ragged, *params)
    assert x_hat_r.shape == (13, output_dim)
    assert jnp.allclose(x_hat_r, ref_r, atol=1e-5, rtol=1e-5)

    # Medium batch (matches the spec's num_samples=1000): 2 balanced tiles,
    # exercises the multi-step / parallel grid path.
    z_big = jax.random.normal(jax.random.PRNGKey(1), (1000, latent_dim),
                              dtype=jnp.float32)
    x_hat_b = jax.block_until_ready(decoder_subnet_forward(z_big, *prepared))
    ref_b = reference_forward(z_big, *params)
    assert x_hat_b.shape == (1000, output_dim)
    assert jnp.allclose(x_hat_b, ref_b, atol=1e-5, rtol=1e-5)

    print("KERNEL_OK")
</pallas_src>

<mosaic_0001>
module attributes {stable_mosaic.version = 11 : i64} {
  func.func @decoder_kernel(%arg0: i32, %arg1: memref<256x15xf32, #tpu.memory_space<vmem>>, %arg2: memref<15x128xf32, #tpu.memory_space<vmem>>, %arg3: memref<1x128xf32, #tpu.memory_space<vmem>>, %arg4: memref<128x128xf32, #tpu.memory_space<vmem>>, %arg5: memref<1x128xf32, #tpu.memory_space<vmem>>, %arg6: memref<128x10xf32, #tpu.memory_space<vmem>>, %arg7: memref<1x10xf32, #tpu.memory_space<vmem>>, %arg8: memref<256x10xf32, #tpu.memory_space<vmem>>) attributes {dimension_semantics = [#tpu.dimension_semantics<parallel>], iteration_bounds = array<i64: 1>, scalar_prefetch = 0 : i64, scratch_operands = 0 : i64, tpu.core_type = #tpu.core_type<tc>, window_params = [{transform_indices = @transform_0, window_bounds = array<i64: 256, 15>}, {pipeline_mode = #tpu.pipeline_mode<synchronous>, transform_indices = @transform_1, window_bounds = array<i64: 15, 128>}, {pipeline_mode = #tpu.pipeline_mode<synchronous>, transform_indices = @transform_2, window_bounds = array<i64: 1, 128>}, {pipeline_mode = #tpu.pipeline_mode<synchronous>, transform_indices = @transform_3, window_bounds = array<i64: 128, 128>}, {pipeline_mode = #tpu.pipeline_mode<synchronous>, transform_indices = @transform_4, window_bounds = array<i64: 1, 128>}, {pipeline_mode = #tpu.pipeline_mode<synchronous>, transform_indices = @transform_5, window_bounds = array<i64: 128, 10>}, {pipeline_mode = #tpu.pipeline_mode<synchronous>, transform_indices = @transform_6, window_bounds = array<i64: 1, 10>}, {transform_indices = @transform_7, window_bounds = array<i64: 256, 10>}]} {
    %c0 = arith.constant 0 : index
    %c0_0 = arith.constant 0 : index
    %0 = vector.load %arg1[%c0, %c0_0] : memref<256x15xf32, #tpu.memory_space<vmem>>, vector<256x15xf32>
    %c0_1 = arith.constant 0 : index
    %c0_2 = arith.constant 0 : index
    %1 = vector.load %arg2[%c0_1, %c0_2] : memref<15x128xf32, #tpu.memory_space<vmem>>, vector<15x128xf32>
    %cst = arith.constant dense<0.000000e+00> : vector<256x128xf32>
    %2 = tpu.matmul %0, %1, %cst {dimension_numbers = #tpu.dot_dimension_numbers<[1], [0], [0], [1], [0, 0, 1, 1], [], []>} : vector<256x15xf32>, vector<15x128xf32>, vector<256x128xf32> -> vector<256x128xf32>
    %c0_3 = arith.constant 0 : index
    %c0_4 = arith.constant 0 : index
    %3 = vector.load %arg3[%c0_3, %c0_4] : memref<1x128xf32, #tpu.memory_space<vmem>>, vector<1x128xf32>
    %4 = vector.broadcast %3 : vector<1x128xf32> to vector<256x128xf32>
    %5 = arith.addf %2, %4 : vector<256x128xf32>
    %6 = math.tanh %5 : vector<256x128xf32>
    %c0_5 = arith.constant 0 : index
    %c0_6 = arith.constant 0 : index
    %7 = vector.load %arg4[%c0_5, %c0_6] : memref<128x128xf32, #tpu.memory_space<vmem>>, vector<128x128xf32>
    %cst_7 = arith.constant dense<0.000000e+00> : vector<256x128xf32>
    %8 = tpu.matmul %6, %7, %cst_7 {dimension_numbers = #tpu.dot_dimension_numbers<[1], [0], [0], [1], [0, 0, 1, 1], [], []>} : vector<256x128xf32>, vector<128x128xf32>, vector<256x128xf32> -> vector<256x128xf32>
    %c0_8 = arith.constant 0 : index
    %c0_9 = arith.constant 0 : index
    %9 = vector.load %arg5[%c0_8, %c0_9] : memref<1x128xf32, #tpu.memory_space<vmem>>, vector<1x128xf32>
    %10 = vector.broadcast %9 : vector<1x128xf32> to vector<256x128xf32>
    %11 = arith.addf %8, %10 : vector<256x128xf32>
    %12 = math.tanh %11 : vector<256x128xf32>
    %c0_10 = arith.constant 0 : index
    %c0_11 = arith.constant 0 : index
    %13 = vector.load %arg6[%c0_10, %c0_11] : memref<128x10xf32, #tpu.memory_space<vmem>>, vector<128x10xf32>
    %cst_12 = arith.constant dense<0.000000e+00> : vector<256x10xf32>
    %14 = tpu.matmul %12, %13, %cst_12 {dimension_numbers = #tpu.dot_dimension_numbers<[1], [0], [0], [1], [0, 0, 1, 1], [], []>} : vector<256x128xf32>, vector<128x10xf32>, vector<256x10xf32> -> vector<256x10xf32>
    %c0_13 = arith.constant 0 : index
    %c0_14 = arith.constant 0 : index
    %15 = vector.load %arg7[%c0_13, %c0_14] : memref<1x10xf32, #tpu.memory_space<vmem>>, vector<1x10xf32>
    %16 = vector.broadcast %15 : vector<1x10xf32> to vector<256x10xf32>
    %17 = arith.addf %14, %16 : vector<256x10xf32>
    %c0_15 = arith.constant 0 : index
    %c0_16 = arith.constant 0 : index
    %18 = vector.load %arg8[%c0_15, %c0_16] : memref<256x10xf32, #tpu.memory_space<vmem>>, vector<256x10xf32>
    tpu.vector_store %arg8[%c0_15, %c0_16], %17 {strides = array<i32>} : memref<256x10xf32, #tpu.memory_space<vmem>>, vector<256x10xf32>,
    return
  }
  func.func @transform_0(%arg0: i32) -> (i32, i32) {
    %c0_i32 = arith.constant 0 : i32
    %c0_i32_0 = arith.constant 0 : i32
    return %arg0, %c0_i32 : i32, i32
  }
  func.func @transform_1(%arg0: i32) -> (i32, i32) {
    %c0_i32 = arith.constant 0 : i32
    %c0_i32_0 = arith.constant 0 : i32
    %c0_i32_1 = arith.constant 0 : i32
    return %c0_i32, %c0_i32_0 : i32, i32
  }
  func.func @transform_2(%arg0: i32) -> (i32, i32) {
    %c0_i32 = arith.constant 0 : i32
    %c0_i32_0 = arith.constant 0 : i32
    %c0_i32_1 = arith.constant 0 : i32
    return %c0_i32, %c0_i32_0 : i32, i32
  }
  func.func @transform_3(%arg0: i32) -> (i32, i32) {
    %c0_i32 = arith.constant 0 : i32
    %c0_i32_0 = arith.constant 0 : i32
    %c0_i32_1 = arith.constant 0 : i32
    return %c0_i32, %c0_i32_0 : i32, i32
  }
  func.func @transform_4(%arg0: i32) -> (i32, i32) {
    %c0_i32 = arith.constant 0 : i32
    %c0_i32_0 = arith.constant 0 : i32
    %c0_i32_1 = arith.constant 0 : i32
    return %c0_i32, %c0_i32_0 : i32, i32
  }
  func.func @transform_5(%arg0: i32) -> (i32, i32) {
    %c0_i32 = arith.constant 0 : i32
    %c0_i32_0 = arith.constant 0 : i32
    %c0_i32_1 = arith.constant 0 : i32
    return %c0_i32, %c0_i32_0 : i32, i32
  }
  func.func @transform_6(%arg0: i32) -> (i32, i32) {
    %c0_i32 = arith.constant 0 : i32
    %c0_i32_0 = arith.constant 0 : i32
    %c0_i32_1 = arith.constant 0 : i32
    return %c0_i32, %c0_i32_0 : i32, i32
  }
  func.func @transform_7(%arg0: i32) -> (i32, i32) {
    %c0_i32 = arith.constant 0 : i32
    %c0_i32_0 = arith.constant 0 : i32
    return %arg0, %c0_i32 : i32, i32
  }
}

</mosaic_0001>

<llo_original>
// kernel: decoder_subnet_forward.1
$region0: #{decoder_subnet_forward.1}
  #allocation0 [shape = 'u32[]', space=smem, size = 0x4, offset = 0x4, fixed_abs, tag = 'smem constant byte address 0x4 - core index']
  #allocation1 [shape = 'u32[144,128]{1,0:T(1,128)}', space=vmem, size = 0x12000, scoped, tag = 'internal scratch']
  %s0 = inlined_call_operand.vmem [shape: f32[256,15], index: 0, kind: input, shape index: {}]
  %s1 = inlined_call_operand.vmem [shape: f32[15,128], index: 1, kind: input, shape index: {}]
  %s2 = inlined_call_operand.vmem [shape: f32[1,128], index: 2, kind: input, shape index: {}]
  %s3 = inlined_call_operand.vmem [shape: f32[128,128], index: 3, kind: input, shape index: {}]
  %s4 = inlined_call_operand.vmem [shape: f32[1,128], index: 4, kind: input, shape index: {}]
  %s5 = inlined_call_operand.vmem [shape: f32[128,10], index: 5, kind: input, shape index: {}]
  %s6 = inlined_call_operand.vmem [shape: f32[1,10], index: 6, kind: input, shape index: {}]
  %s7 = inlined_call_operand.vmem [shape: f32[256,10], index: 7, kind: output, shape index: {}]
  %s8 = sld [smem:[#allocation0]]
  $region38: #{decoder_subnet_forward.1} parent=0
    _
  %s10 = ssub.s32 1, %s8
  %s11 = scalar_select 0, %s10, %s8
  // Predicated region
  $region2: #{decoder_subnet_forward.1} parent=0 // pred_check
    _
  $region3: #{decoder_subnet_forward.1} parent=0 // pred_check_branch
    %13 = sbr.rel (0) target = $region5
  $region4: #{decoder_subnet_forward.1} parent=0 // pred_region
    _
  $region5: #{decoder_subnet_forward.1} parent=0 // pred_fallthru
    _
  // Predicated region
  $region6: #{decoder_subnet_forward.1} parent=0 // pred_check
    _
  $region7: #{decoder_subnet_forward.1} parent=0 // pred_check_branch
    %15 = sbr.rel (0) target = $region9
  $region8: #{decoder_subnet_forward.1} parent=0 // pred_region
    _
  $region9: #{decoder_subnet_forward.1} parent=0 // pred_fallthru
    _
  // Predicated region
  $region10: #{decoder_subnet_forward.1} parent=0 // pred_check
    _
  $region11: #{decoder_subnet_forward.1} parent=0 // pred_check_branch
    %17 = sbr.rel (0) target = $region13
  $region12: #{decoder_subnet_forward.1} parent=0 // pred_region
    _
  $region13: #{decoder_subnet_forward.1} parent=0 // pred_fallthru
    _
  // Predicated region
  $region14: #{decoder_subnet_forward.1} parent=0 // pred_check
    _
  $region15: #{decoder_subnet_forward.1} parent=0 // pred_check_branch
    %19 = sbr.rel (0) target = $region17
  $region16: #{decoder_subnet_forward.1} parent=0 // pred_region
    _
  $region17: #{decoder_subnet_forward.1} parent=0 // pred_fallthru
    _
  // Predicated region
  $region18: #{decoder_subnet_forward.1} parent=0 // pred_check
    _
  $region19: #{decoder_subnet_forward.1} parent=0 // pred_check_branch
    %21 = sbr.rel (0) target = $region21
  $region20: #{decoder_subnet_forward.1} parent=0 // pred_region
    _
  $region21: #{decoder_subnet_forward.1} parent=0 // pred_fallthru
    _
  // Predicated region
  $region22: #{decoder_subnet_forward.1} parent=0 // pred_check
    _
  $region23: #{decoder_subnet_forward.1} parent=0 // pred_check_branch
    %23 = sbr.rel (0) target = $region25
  $region24: #{decoder_subnet_forward.1} parent=0 // pred_region
    _
  $region25: #{decoder_subnet_forward.1} parent=0 // pred_fallthru
    _
  // Predicated region
  $region26: #{decoder_subnet_forward.1} parent=0 // pred_check
    _
  $region27: #{decoder_subnet_forward.1} parent=0 // pred_check_branch
    %25 = sbr.rel (0) target = $region29
  $region28: #{decoder_subnet_forward.1} parent=0 // pred_region
    _
  $region29: #{decoder_subnet_forward.1} parent=0 // pred_fallthru
    _
  %v26 = vld [vmem:[%s0] sm:$0xff]
  %v27 = vld [vmem:[%s0 + $0x8] sm:$0xff]
  %v28 = vld [vmem:[%s0 + $0x10] sm:$0xff]
  %v29 = vld [vmem:[%s0 + $0x18] sm:$0xff]
  %v30 = vld [vmem:[%s0 + $0x20] sm:$0xff]
  %v31 = vld [vmem:[%s0 + $0x28] sm:$0xff]
  %v32 = vld [vmem:[%s0 + $0x30] sm:$0xff]
  %v33 = vld [vmem:[%s0 + $0x38] sm:$0xff]
  %v34 = vld [vmem:[%s0 + $0x40] sm:$0xff]
  %v35 = vld [vmem:[%s0 + $0x48] sm:$0xff]
  %v36 = vld [vmem:[%s0 + $0x50] sm:$0xff]
  %v37 = vld [vmem:[%s0 + $0x58] sm:$0xff]
  %v38 = vld [vmem:[%s0 + $0x60] sm:$0xff]
  %v39 = vld [vmem:[%s0 + $0x68] sm:$0xff]
  %v40 = vld [vmem:[%s0 + $0x70] sm:$0xff]
  %v41 = vld [vmem:[%s0 + $0x78] sm:$0xff]
  %v42 = vld [vmem:[%s0 + $0x80] sm:$0xff]
  %v43 = vld [vmem:[%s0 + $0x88] sm:$0xff]
  %v44 = vld [vmem:[%s0 + $0x90] sm:$0xff]
  %v45 = vld [vmem:[%s0 + $0x98] sm:$0xff]
  %v46 = vld [vmem:[%s0 + $0xa0] sm:$0xff]
  %v47 = vld [vmem:[%s0 + $0xa8] sm:$0xff]
  %v48 = vld [vmem:[%s0 + $0xb0] sm:$0xff]
  %v49 = vld [vmem:[%s0 + $0xb8] sm:$0xff]
  %v50 = vld [vmem:[%s0 + $0xc0] sm:$0xff]
  %v51 = vld [vmem:[%s0 + $0xc8] sm:$0xff]
  %v52 = vld [vmem:[%s0 + $0xd0] sm:$0xff]
  %v53 = vld [vmem:[%s0 + $0xd8] sm:$0xff]
  %v54 = vld [vmem:[%s0 + $0xe0] sm:$0xff]
  %v55 = vld [vmem:[%s0 + $0xe8] sm:$0xff]
  %v56 = vld [vmem:[%s0 + $0xf0] sm:$0xff]
  %v57 = vld [vmem:[%s0 + $0xf8] sm:$0xff]
  %v58 = vld [vmem:[%s1] sm:$0xff]
  %v59 = vld [vmem:[%s1 + $0x8] sm:$0x7f]
  %v60 = vld [vmem:[%s2] sm:$0x1]
  %v62 = vlaneseq
  %v63 = vshrl.u32 %v62, 7
  %v64 = vsub.s32 0, %v63
  %v65 = vrot.slane %v60, %v64
  %vm67 = vcmask 121856
  %v69 = vsel %vm67, %v26, 0
  %v72 = vsel %vm67, %v27, 0
  %v75 = vsel %vm67, %v28, 0
  %v78 = vsel %vm67, %v29, 0
  %v81 = vsel %vm67, %v30, 0
  %v84 = vsel %vm67, %v31, 0
  %v87 = vsel %vm67, %v32, 0
  %v90 = vsel %vm67, %v33, 0
  %v93 = vsel %vm67, %v34, 0
  %v96 = vsel %vm67, %v35, 0
  %v99 = vsel %vm67, %v36, 0
  %v102 = vsel %vm67, %v37, 0
  %v105 = vsel %vm67, %v38, 0
  %v108 = vsel %vm67, %v39, 0
  %v111 = vsel %vm67, %v40, 0
  %v114 = vsel %vm67, %v41, 0
  %v117 = vsel %vm67, %v42, 0
  %v120 = vsel %vm67, %v43, 0
  %v123 = vsel %vm67, %v44, 0
  %v126 = vsel %vm67, %v45, 0
  %v129 = vsel %vm67, %v46, 0
  %v132 = vsel %vm67, %v47, 0
  %v135 = vsel %vm67, %v48, 0
  %v138 = vsel %vm67, %v49, 0
  %v141 = vsel %vm67, %v50, 0
  %v144 = vsel %vm67, %v51, 0
  %v147 = vsel %vm67, %v52, 0
  %v150 = vsel %vm67, %v53, 0
  %v153 = vsel %vm67, %v54, 0
  %v156 = vsel %vm67, %v55, 0
  %v159 = vsel %vm67, %v56, 0
  %v162 = vsel %vm67, %v57, 0
  %vm164 = vcmask 1046528
  %v166 = vsel %vm164, %v59, 0
  %168 = vmatprep.subr.mxu0 0.0
  %169 = vmatpush1.msra.mxu0 %v58
  %170 = vmatprep.subr.mxu0 0.0
  %171 = vmatpush1.msra.mxu0 %v166
  %172 = vmatprep.subr.mxu0 0.0
  %173 = vmatpush1.msra.mxu0 0.0
  %174 = vmatprep.subr.mxu0 0.0
  %175 = vmatpush1.msra.mxu0 0.0
  %176 = vmatprep.subr.mxu0 0.0
  %177 = vmatpush1.msra.mxu0 0.0
  %178 = vmatprep.subr.mxu0 0.0
  %179 = vmatpush1.msra.mxu0 0.0
  %180 = vmatprep.subr.mxu0 0.0
  %181 = vmatpush1.msra.mxu0 0.0
  %182 = vmatprep.subr.mxu0 0.0
  %183 = vmatpush1.msra.mxu0 0.0
  %184 = vmatprep.subr.mxu0 0.0
  %185 = vmatpush1.msra.mxu0 0.0
  %186 = vmatprep.subr.mxu0 0.0
  %187 = vmatpush1.msra.mxu0 0.0
  %188 = vmatprep.subr.mxu0 0.0
  %189 = vmatpush1.msra.mxu0 0.0
  %190 = vmatprep.subr.mxu0 0.0
  %191 = vmatpush1.msra.mxu0 0.0
  %192 = vmatprep.subr.mxu0 0.0
  %193 = vmatpush1.msra.mxu0 0.0
  %194 = vmatprep.subr.mxu0 0.0
  %195 = vmatpush1.msra.mxu0 0.0
  %196 = vmatprep.subr.mxu0 0.0
  %197 = vmatpush1.msra.mxu0 0.0
  %198 = vmatprep.subr.mxu0 0.0
  %199 = vmatpush1.msra.mxu0 0.0
  %200 = vmatprep.subr.mxu0 0.0
  %201 = vmatpush1.msra.mxu0 0.0
  %202 = vmatprep.subr.mxu0 0.0
  %203 = vmatpush1.msra.mxu0 0.0
  %204 = vmatprep.subr.mxu0 0.0
  %205 = vmatpush1.msra.mxu0 0.0
  %206 = vmatprep.subr.mxu0 0.0
  %207 = vmatpush1.msra.mxu0 0.0
  %208 = vmatprep.subr.mxu0 0.0
  %209 = vmatpush1.msra.mxu0 0.0
  %210 = vmatprep.subr.mxu0 0.0
  %211 = vmatpush1.msra.mxu0 0.0
  %212 = vmatprep.subr.mxu0 0.0
  %213 = vmatpush1.msra.mxu0 0.0
  %214 = vmatprep.subr.mxu0 0.0
  %215 = vmatpush1.msra.mxu0 0.0
  %216 = vmatprep.subr.mxu0 0.0
  %217 = vmatpush1.msra.mxu0 0.0
  %218 = vmatprep.subr.mxu0 0.0
  %219 = vmatpush1.msra.mxu0 0.0
  %220 = vmatprep.subr.mxu0 0.0
  %221 = vmatpush1.msra.mxu0 0.0
  %222 = vmatprep.subr.mxu0 0.0
  %223 = vmatpush1.msra.mxu0 0.0
  %224 = vmatprep.subr.mxu0 0.0
  %225 = vmatpush1.msra.mxu0 0.0
  %226 = vmatprep.subr.mxu0 0.0
  %227 = vmatpush1.msra.mxu0 0.0
  %228 = vmatprep.subr.mxu0 0.0
  %229 = vmatpush1.msra.mxu0 0.0
  %230 = vmatprep.subr.mxu0 0.0
  %231 = vmatpush1.msra.mxu0 0.0
  %232 = vmatprep.mubr.f32.mxu0 0.0
  %233 = vmatmul.mubr.f32.gmra.mrb[0].mxu0 %v69
  %v234 = vpop.f32.mrb[0].mxu0
  %v235 = vadd.f32 %v65, %v234
  %v236 = vpop.f32.mrb[0].mxu0
  %237 = vmatprep.mubr.f32.mxu0 0.0
  %238 = vmatmul.mubr.f32.gmra.mrb[0].mxu0 %v72
  %v239 = vpop.f32.mrb[0].mxu0
  %v240 = vadd.f32 %v65, %v239
  %v241 = vpop.f32.mrb[0].mxu0
  %242 = vmatprep.mubr.f32.mxu0 0.0
  %243 = vmatmul.mubr.f32.gmra.mrb[0].mxu0 %v75
  %v244 = vpop.f32.mrb[0].mxu0
  %v245 = vadd.f32 %v65, %v244
  %v246 = vpop.f32.mrb[0].mxu0
  %247 = vmatprep.mubr.f32.mxu0 0.0
  %248 = vmatmul.mubr.f32.gmra.mrb[0].mxu0 %v78
  %v249 = vpop.f32.mrb[0].mxu0
  %v250 = vadd.f32 %v65, %v249
  %v251 = vpop.f32.mrb[0].mxu0
  %252 = vmatprep.mubr.f32.mxu0 0.0
  %253 = vmatmul.mubr.f32.gmra.mrb[0].mxu0 %v81
  %v254 = vpop.f32.mrb[0].mxu0
  %v255 = vadd.f32 %v65, %v254
  %v256 = vpop.f32.mrb[0].mxu0
  %257 = vmatprep.mubr.f32.mxu0 0.0
  %258 = vmatmul.mubr.f32.gmra.mrb[0].mxu0 %v84
  %v259 = vpop.f32.mrb[0].mxu0
  %v260 = vadd.f32 %v65, %v259
  %v261 = vpop.f32.mrb[0].mxu0
  %262 = vmatprep.mubr.f32.mxu0 0.0
  %263 = vmatmul.mubr.f32.gmra.mrb[0].mxu0 %v87
  %v264 = vpop.f32.mrb[0].mxu0
  %v265 = vadd.f32 %v65, %v264
  %v266 = vpop.f32.mrb[0].mxu0
  %267 = vmatprep.mubr.f32.mxu0 0.0
  %268 = vmatmul.mubr.f32.gmra.mrb[0].mxu0 %v90
  %v269 = vpop.f32.mrb[0].mxu0
  %v270 = vadd.f32 %v65, %v269
  %v271 = vpop.f32.mrb[0].mxu0
  %272 = vmatprep.mubr.f32.mxu0 0.0
  %273 = vmatmul.mubr.f32.gmra.mrb[0].mxu0 %v93
  %v274 = vpop.f32.mrb[0].mxu0
  %v275 = vadd.f32 %v65, %v274
  %v276 = vpop.f32.mrb[0].mxu0
  %277 = vmatprep.mubr.f32.mxu0 0.0
  %278 = vmatmul.mubr.f32.gmra.mrb[0].mxu0 %v96
  %v279 = vpop.f32.mrb[0].mxu0
  %v280 = vadd.f32 %v65, %v279
  %v281 = vpop.f32.mrb[0].mxu0
  %282 = vmatprep.mubr.f32.mxu0 0.0
  %283 = vmatmul.mubr.f32.gmra.mrb[0].mxu0 %v99
  %v284 = vpop.f32.mrb[0].mxu0
  %v285 = vadd.f32 %v65, %v284
  %v286 = vpop.f32.mrb[0].mxu0
  %287 = vmatprep.mubr.f32.mxu0 0.0
  %288 = vmatmul.mubr.f32.gmra.mrb[0].mxu0 %v102
  %v289 = vpop.f32.mrb[0].mxu0
  %v290 = vadd.f32 %v65, %v289
  %v291 = vpop.f32.mrb[0].mxu0
  %292 = vmatprep.mubr.f32.mxu0 0.0
  %293 = vmatmul.mubr.f32.gmra.mrb[0].mxu0 %v105
  %v294 = vpop.f32.mrb[0].mxu0
  %v295 = vadd.f32 %v65, %v294
  %v296 = vpop.f32.mrb[0].mxu0
  %297 = vmatprep.mubr.f32.mxu0 0.0
  %298 = vmatmul.mubr.f32.gmra.mrb[0].mxu0 %v108
  %v299 = vpop.f32.mrb[0].mxu0
  %v300 = vadd.f32 %v65, %v299
  %v301 = vpop.f32.mrb[0].mxu0
  %302 = vmatprep.mubr.f32.mxu0 0.0
  %303 = vmatmul.mubr.f32.gmra.mrb[0].mxu0 %v111
  %v304 = vpop.f32.mrb[0].mxu0
  %v305 = vadd.f32 %v65, %v304
  %v306 = vpop.f32.mrb[0].mxu0
  %307 = vmatprep.mubr.f32.mxu0 0.0
  %308 = vmatmul.mubr.f32.gmra.mrb[0].mxu0 %v114
  %v309 = vpop.f32.mrb[0].mxu0
  %v310 = vadd.f32 %v65, %v309
  %v311 = vpop.f32.mrb[0].mxu0
  %312 = vmatprep.mubr.f32.mxu0 0.0
  %313 = vmatmul.mubr.f32.gmra.mrb[0].mxu0 %v117
  %v314 = vpop.f32.mrb[0].mxu0
  %v315 = vadd.f32 %v65, %v314
  %v316 = vpop.f32.mrb[0].mxu0
  %317 = vmatprep.mubr.f32.mxu0 0.0
  %318 = vmatmul.mubr.f32.gmra.mrb[0].mxu0 %v120
  %v319 = vpop.f32.mrb[0].mxu0
  %v320 = vadd.f32 %v65, %v319
  %v321 = vpop.f32.mrb[0].mxu0
  %322 = vmatprep.mubr.f32.mxu0 0.0
  %323 = vmatmul.mubr.f32.gmra.mrb[0].mxu0 %v123
  %v324 = vpop.f32.mrb[0].mxu0
  %v325 = vadd.f32 %v65, %v324
  %v326 = vpop.f32.mrb[0].mxu0
  %327 = vmatprep.mubr.f32.mxu0 0.0
  %328 = vmatmul.mubr.f32.gmra.mrb[0].mxu0 %v126
  %v329 = vpop.f32.mrb[0].mxu0
  %v330 = vadd.f32 %v65, %v329
  %v331 = vpop.f32.mrb[0].mxu0
  %332 = vmatprep.mubr.f32.mxu0 0.0
  %333 = vmatmul.mubr.f32.gmra.mrb[0].mxu0 %v129
  %v334 = vpop.f32.mrb[0].mxu0
  %v335 = vadd.f32 %v65, %v334
  %v336 = vpop.f32.mrb[0].mxu0
  %337 = vmatprep.mubr.f32.mxu0 0.0
  %338 = vmatmul.mubr.f32.gmra.mrb[0].mxu0 %v132
  %v339 = vpop.f32.mrb[0].mxu0
  %v340 = vadd.f32 %v65, %v339
  %v341 = vpop.f32.mrb[0].mxu0
  %342 = vmatprep.mubr.f32.mxu0 0.0
  %343 = vmatmul.mubr.f32.gmra.mrb[0].mxu0 %v135
  %v344 = vpop.f32.mrb[0].mxu0
  %v345 = vadd.f32 %v65, %v344
  %v346 = vpop.f32.mrb[0].mxu0
  %347 = vmatprep.mubr.f32.mxu0 0.0
  %348 = vmatmul.mubr.f32.gmra.mrb[0].mxu0 %v138
  %v349 = vpop.f32.mrb[0].mxu0
  %v350 = vadd.f32 %v65, %v349
  %v351 = vpop.f32.mrb[0].mxu0
  %352 = vmatprep.mubr.f32.mxu0 0.0
  %353 = vmatmul.mubr.f32.gmra.mrb[0].mxu0 %v141
  %v354 = vpop.f32.mrb[0].mxu0
  %v355 = vadd.f32 %v65, %v354
  %v356 = vpop.f32.mrb[0].mxu0
  %357 = vmatprep.mubr.f32.mxu0 0.0
  %358 = vmatmul.mubr.f32.gmra.mrb[0].mxu0 %v144
  %v359 = vpop.f32.mrb[0].mxu0
  %v360 = vadd.f32 %v65, %v359
  %v361 = vpop.f32.mrb[0].mxu0
  %362 = vmatprep.mubr.f32.mxu0 0.0
  %363 = vmatmul.mubr.f32.gmra.mrb[0].mxu0 %v147
  %v364 = vpop.f32.mrb[0].mxu0
  %v365 = vadd.f32 %v65, %v364
  %v366 = vpop.f32.mrb[0].mxu0
  %367 = vmatprep.mubr.f32.mxu0 0.0
  %368 = vmatmul.mubr.f32.gmra.mrb[0].mxu0 %v150
  %v369 = vpop.f32.mrb[0].mxu0
  %v370 = vadd.f32 %v65, %v369
  %v371 = vpop.f32.mrb[0].mxu0
  %372 = vmatprep.mubr.f32.mxu0 0.0
  %373 = vmatmul.mubr.f32.gmra.mrb[0].mxu0 %v153
  %v374 = vpop.f32.mrb[0].mxu0
  %v375 = vadd.f32 %v65, %v374
  %v376 = vpop.f32.mrb[0].mxu0
  %377 = vmatprep.mubr.f32.mxu0 0.0
  %378 = vmatmul.mubr.f32.gmra.mrb[0].mxu0 %v156
  %v379 = vpop.f32.mrb[0].mxu0
  %v380 = vadd.f32 %v65, %v379
  %v381 = vpop.f32.mrb[0].mxu0
  %382 = vmatprep.mubr.f32.mxu0 0.0
  %383 = vmatmul.mubr.f32.gmra.mrb[0].mxu0 %v159
  %v384 = vpop.f32.mrb[0].mxu0
  %v385 = vadd.f32 %v65, %v384
  %v386 = vpop.f32.mrb[0].mxu0
  %387 = vmatprep.mubr.f32.mxu0 0.0
  %388 = vmatmul.mubr.f32.gmra.mrb[0].mxu0 %v162
  %v389 = vpop.f32.mrb[0].mxu0
  %v390 = vadd.f32 %v65, %v389
  %v391 = vpop.f32.mrb[0].mxu0
  %392 = vdwg.mxu0
  %v393 = vtanh.pop %v235
  %v394 = vtanh.pop %v240
  %v395 = vtanh.pop %v245
  %v396 = vtanh.pop %v250
  %v397 = vtanh.pop %v255
  %v398 = vtanh.pop %v260
  %v399 = vtanh.pop %v265
  %v400 = vtanh.pop %v270
  %v401 = vtanh.pop %v275
  %v402 = vtanh.pop %v280
  %v403 = vtanh.pop %v285
  %v404 = vtanh.pop %v290
  %v405 = vtanh.pop %v295
  %v406 = vtanh.pop %v300
  %v407 = vtanh.pop %v305
  %v408 = vtanh.pop %v310
  %v409 = vtanh.pop %v315
  %v410 = vtanh.pop %v320
  %v411 = vtanh.pop %v325
  %v412 = vtanh.pop %v330
  %v413 = vtanh.pop %v335
  %v414 = vtanh.pop %v340
  %v415 = vtanh.pop %v345
  %v416 = vtanh.pop %v350
  %v417 = vtanh.pop %v355
  %v418 = vtanh.pop %v360
  %v419 = vtanh.pop %v365
  %v420 = vtanh.pop %v370
  %v421 = vtanh.pop %v375
  %v422 = vtanh.pop %v380
  %v423 = vtanh.pop %v385
  %v424 = vtanh.pop %v390
  %v425 = vld [vmem:[%s3] sm:$0xff]
  %v426 = vld [vmem:[%s3 + $0x8] sm:$0xff]
  %v427 = vld [vmem:[%s3 + $0x10] sm:$0xff]
  %v428 = vld [vmem:[%s3 + $0x18] sm:$0xff]
  %v429 = vld [vmem:[%s3 + $0x20] sm:$0xff]
  %v430 = vld [vmem:[%s3 + $0x28] sm:$0xff]
  %v431 = vld [vmem:[%s3 + $0x30] sm:$0xff]
  %v432 = vld [vmem:[%s3 + $0x38] sm:$0xff]
  %v433 = vld [vmem:[%s3 + $0x40] sm:$0xff]
  %v434 = vld [vmem:[%s3 + $0x48] sm:$0xff]
  %v435 = vld [vmem:[%s3 + $0x50] sm:$0xff]
  %v436 = vld [vmem:[%s3 + $0x58] sm:$0xff]
  %v437 = vld [vmem:[%s3 + $0x60] sm:$0xff]
  %v438 = vld [vmem:[%s3 + $0x68] sm:$0xff]
  %v439 = vld [vmem:[%s3 + $0x70] sm:$0xff]
  %v440 = vld [vmem:[%s3 + $0x78] sm:$0xff]
  %v441 = vld [vmem:[%s4] sm:$0x1]
  %v443 = vlaneseq
  %v444 = vshrl.u32 %v443, 7
  %v445 = vsub.s32 0, %v444
  %v446 = vrot.slane %v441, %v445
  %448 = vmatprep.subr.mxu0 0.0
  %449 = vmatpush1.msra.mxu0 %v425
  %450 = vmatprep.subr.mxu0 0.0
  %451 = vmatpush1.msra.mxu0 %v426
  %452 = vmatprep.subr.mxu0 0.0
  %453 = vmatpush1.msra.mxu0 %v427
  %454 = vmatprep.subr.mxu0 0.0
  %455 = vmatpush1.msra.mxu0 %v428
  %456 = vmatprep.subr.mxu0 0.0
  %457 = vmatpush1.msra.mxu0 %v429
  %458 = vmatprep.subr.mxu0 0.0
  %459 = vmatpush1.msra.mxu0 %v430
  %460 = vmatprep.subr.mxu0 0.0
  %461 = vmatpush1.msra.mxu0 %v431
  %462 = vmatprep.subr.mxu0 0.0
  %463 = vmatpush1.msra.mxu0 %v432
  %464 = vmatprep.subr.mxu0 0.0
  %465 = vmatpush1.msra.mxu0 %v433
  %466 = vmatprep.subr.mxu0 0.0
  %467 = vmatpush1.msra.mxu0 %v434
  %468 = vmatprep.subr.mxu0 0.0
  %469 = vmatpush1.msra.mxu0 %v435
  %470 = vmatprep.subr.mxu0 0.0
  %471 = vmatpush1.msra.mxu0 %v436
  %472 = vmatprep.subr.mxu0 0.0
  %473 = vmatpush1.msra.mxu0 %v437
  %474 = vmatprep.subr.mxu0 0.0
  %475 = vmatpush1.msra.mxu0 %v438
  %476 = vmatprep.subr.mxu0 0.0
  %477 = vmatpush1.msra.mxu0 %v439
  %478 = vmatprep.subr.mxu0 0.0
  %479 = vmatpush1.msra.mxu0 %v440
  %480 = vmatprep.subr.mxu0 0.0
  %481 = vmatpush1.msra.mxu0 0.0
  %482 = vmatprep.subr.mxu0 0.0
  %483 = vmatpush1.msra.mxu0 0.0
  %484 = vmatprep.subr.mxu0 0.0
  %485 = vmatpush1.msra.mxu0 0.0
  %486 = vmatprep.subr.mxu0 0.0
  %487 = vmatpush1.msra.mxu0 0.0
  %488 = vmatprep.subr.mxu0 0.0
  %489 = vmatpush1.msra.mxu0 0.0
  %490 = vmatprep.subr.mxu0 0.0
  %491 = vmatpush1.msra.mxu0 0.0
  %492 = vmatprep.subr.mxu0 0.0
  %493 = vmatpush1.msra.mxu0 0.0
  %494 = vmatprep.subr.mxu0 0.0
  %495 = vmatpush1.msra.mxu0 0.0
  %496 = vmatprep.subr.mxu0 0.0
  %497 = vmatpush1.msra.mxu0 0.0
  %498 = vmatprep.subr.mxu0 0.0
  %499 = vmatpush1.msra.mxu0 0.0
  %500 = vmatprep.subr.mxu0 0.0
  %501 = vmatpush1.msra.mxu0 0.0
  %502 = vmatprep.subr.mxu0 0.0
  %503 = vmatpush1.msra.mxu0 0.0
  %504 = vmatprep.subr.mxu0 0.0
  %505 = vmatpush1.msra.mxu0 0.0
  %506 = vmatprep.subr.mxu0 0.0
  %507 = vmatpush1.msra.mxu0 0.0
  %508 = vmatprep.subr.mxu0 0.0
  %509 = vmatpush1.msra.mxu0 0.0
  %510 = vmatprep.subr.mxu0 0.0
  %511 = vmatpush1.msra.mxu0 0.0
  %512 = vmatprep.mubr.f32.mxu0 0.0
  %513 = vmatmul.mubr.f32.gmra.mrb[0].mxu0 %v393
  %v514 = vpop.f32.mrb[0].mxu0
  %v515 = vadd.f32 %v446, %v514
  %v516 = vpop.f32.mrb[0].mxu0
  %517 = vmatprep.mubr.f32.mxu0 0.0
  %518 = vmatmul.mubr.f32.gmra.mrb[0].mxu0 %v394
  %v519 = vpop.f32.mrb[0].mxu0
  %v520 = vadd.f32 %v446, %v519
  %v521 = vpop.f32.mrb[0].mxu0
  %522 = vmatprep.mubr.f32.mxu0 0.0
  %523 = vmatmul.mubr.f32.gmra.mrb[0].mxu0 %v395
  %v524 = vpop.f32.mrb[0].mxu0
  %v525 = vadd.f32 %v446, %v524
  %v526 = vpop.f32.mrb[0].mxu0
  %527 = vmatprep.mubr.f32.mxu0 0.0
  %528 = vmatmul.mubr.f32.gmra.mrb[0].mxu0 %v396
  %v529 = vpop.f32.mrb[0].mxu0
  %v530 = vadd.f32 %v446, %v529
  %v531 = vpop.f32.mrb[0].mxu0
  %532 = vmatprep.mubr.f32.mxu0 0.0
  %533 = vmatmul.mubr.f32.gmra.mrb[0].mxu0 %v397
  %v534 = vpop.f32.mrb[0].mxu0
  %v535 = vadd.f32 %v446, %v534
  %v536 = vpop.f32.mrb[0].mxu0
  %537 = vmatprep.mubr.f32.mxu0 0.0
  %538 = vmatmul.mubr.f32.gmra.mrb[0].mxu0 %v398
  %v539 = vpop.f32.mrb[0].mxu0
  %v540 = vadd.f32 %v446, %v539
  %v541 = vpop.f32.mrb[0].mxu0
  %542 = vmatprep.mubr.f32.mxu0 0.0
  %543 = vmatmul.mubr.f32.gmra.mrb[0].mxu0 %v399
  %v544 = vpop.f32.mrb[0].mxu0
  %v545 = vadd.f32 %v446, %v544
  %v546 = vpop.f32.mrb[0].mxu0
  %547 = vmatprep.mubr.f32.mxu0 0.0
  %548 = vmatmul.mubr.f32.gmra.mrb[0].mxu0 %v400
  %v549 = vpop.f32.mrb[0].mxu0
  %v550 = vadd.f32 %v446, %v549
  %v551 = vpop.f32.mrb[0].mxu0
  %552 = vmatprep.mubr.f32.mxu0 0.0
  %553 = vmatmul.mubr.f32.gmra.mrb[0].mxu0 %v401
  %v554 = vpop.f32.mrb[0].mxu0
  %v555 = vadd.f32 %v446, %v554
  %v556 = vpop.f32.mrb[0].mxu0
  %557 = vmatprep.mubr.f32.mxu0 0.0
  %558 = vmatmul.mubr.f32.gmra.mrb[0].mxu0 %v402
  %v559 = vpop.f32.mrb[0].mxu0
  %v560 = vadd.f32 %v446, %v559
  %v561 = vpop.f32.mrb[0].mxu0
  %562 = vmatprep.mubr.f32.mxu0 0.0
  %563 = vmatmul.mubr.f32.gmra.mrb[0].mxu0 %v403
  %v564 = vpop.f32.mrb[0].mxu0
  %v565 = vadd.f32 %v446, %v564
  %v566 = vpop.f32.mrb[0].mxu0
  %567 = vmatprep.mubr.f32.mxu0 0.0
  %568 = vmatmul.mubr.f32.gmra.mrb[0].mxu0 %v404
  %v569 = vpop.f32.mrb[0].mxu0
  %v570 = vadd.f32 %v446, %v569
  %v571 = vpop.f32.mrb[0].mxu0
  %572 = vmatprep.mubr.f32.mxu0 0.0
  %573 = vmatmul.mubr.f32.gmra.mrb[0].mxu0 %v405
  %v574 = vpop.f32.mrb[0].mxu0
  %v575 = vadd.f32 %v446, %v574
  %v576 = vpop.f32.mrb[0].mxu0
  %577 = vmatprep.mubr.f32.mxu0 0.0
  %578 = vmatmul.mubr.f32.gmra.mrb[0].mxu0 %v406
  %v579 = vpop.f32.mrb[0].mxu0
  %v580 = vadd.f32 %v446, %v579
  %v581 = vpop.f32.mrb[0].mxu0
  %582 = vmatprep.mubr.f32.mxu0 0.0
  %583 = vmatmul.mubr.f32.gmra.mrb[0].mxu0 %v407
  %v584 = vpop.f32.mrb[0].mxu0
  %v585 = vadd.f32 %v446, %v584
  %v586 = vpop.f32.mrb[0].mxu0
  %587 = vmatprep.mubr.f32.mxu0 0.0
  %588 = vmatmul.mubr.f32.gmra.mrb[0].mxu0 %v408
  %v589 = vpop.f32.mrb[0].mxu0
  %v590 = vadd.f32 %v446, %v589
  %v591 = vpop.f32.mrb[0].mxu0
  %592 = vmatprep.mubr.f32.mxu0 0.0
  %593 = vmatmul.mubr.f32.gmra.mrb[0].mxu0 %v409
  %v594 = vpop.f32.mrb[0].mxu0
  %v595 = vadd.f32 %v446, %v594
  %v596 = vpop.f32.mrb[0].mxu0
  %597 = vmatprep.mubr.f32.mxu0 0.0
  %598 = vmatmul.mubr.f32.gmra.mrb[0].mxu0 %v410
  %v599 = vpop.f32.mrb[0].mxu0
  %v600 = vadd.f32 %v446, %v599
  %v601 = vpop.f32.mrb[0].mxu0
  %602 = vmatprep.mubr.f32.mxu0 0.0
  %603 = vmatmul.mubr.f32.gmra.mrb[0].mxu0 %v411
  %v604 = vpop.f32.mrb[0].mxu0
  %v605 = vadd.f32 %v446, %v604
  %v606 = vpop.f32.mrb[0].mxu0
  %607 = vmatprep.mubr.f32.mxu0 0.0
  %608 = vmatmul.mubr.f32.gmra.mrb[0].mxu0 %v412
  %v609 = vpop.f32.mrb[0].mxu0
  %v610 = vadd.f32 %v446, %v609
  %v611 = vpop.f32.mrb[0].mxu0
  %612 = vmatprep.mubr.f32.mxu0 0.0
  %613 = vmatmul.mubr.f32.gmra.mrb[0].mxu0 %v413
  %v614 = vpop.f32.mrb[0].mxu0
  %v615 = vadd.f32 %v446, %v614
  %v616 = vpop.f32.mrb[0].mxu0
  %617 = vmatprep.mubr.f32.mxu0 0.0
  %618 = vmatmul.mubr.f32.gmra.mrb[0].mxu0 %v414
  %v619 = vpop.f32.mrb[0].mxu0
  %v620 = vadd.f32 %v446, %v619
  %v621 = vpop.f32.mrb[0].mxu0
  %622 = vmatprep.mubr.f32.mxu0 0.0
  %623 = vmatmul.mubr.f32.gmra.mrb[0].mxu0 %v415
  %v624 = vpop.f32.mrb[0].mxu0
  %v625 = vadd.f32 %v446, %v624
  %v626 = vpop.f32.mrb[0].mxu0
  %627 = vmatprep.mubr.f32.mxu0 0.0
  %628 = vmatmul.mubr.f32.gmra.mrb[0].mxu0 %v416
  %v629 = vpop.f32.mrb[0].mxu0
  %v630 = vadd.f32 %v446, %v629
  %v631 = vpop.f32.mrb[0].mxu0
  %632 = vmatprep.mubr.f32.mxu0 0.0
  %633 = vmatmul.mubr.f32.gmra.mrb[0].mxu0 %v417
  %v634 = vpop.f32.mrb[0].mxu0
  %v635 = vadd.f32 %v446, %v634
  %v636 = vpop.f32.mrb[0].mxu0
  %637 = vmatprep.mubr.f32.mxu0 0.0
  %638 = vmatmul.mubr.f32.gmra.mrb[0].mxu0 %v418
  %v639 = vpop.f32.mrb[0].mxu0
  %v640 = vadd.f32 %v446, %v639
  %v641 = vpop.f32.mrb[0].mxu0
  %642 = vmatprep.mubr.f32.mxu0 0.0
  %643 = vmatmul.mubr.f32.gmra.mrb[0].mxu0 %v419
  %v644 = vpop.f32.mrb[0].mxu0
  %v645 = vadd.f32 %v446, %v644
  %v646 = vpop.f32.mrb[0].mxu0
  %647 = vmatprep.mubr.f32.mxu0 0.0
  %648 = vmatmul.mubr.f32.gmra.mrb[0].mxu0 %v420
  %v649 = vpop.f32.mrb[0].mxu0
  %v650 = vadd.f32 %v446, %v649
  %v651 = vpop.f32.mrb[0].mxu0
  %652 = vmatprep.mubr.f32.mxu0 0.0
  %653 = vmatmul.mubr.f32.gmra.mrb[0].mxu0 %v421
  %v654 = vpop.f32.mrb[0].mxu0
  %v655 = vadd.f32 %v446, %v654
  %v656 = vpop.f32.mrb[0].mxu0
  %657 = vmatprep.mubr.f32.mxu0 0.0
  %658 = vmatmul.mubr.f32.gmra.mrb[0].mxu0 %v422
  %v659 = vpop.f32.mrb[0].mxu0
  %v660 = vadd.f32 %v446, %v659
  %v661 = vpop.f32.mrb[0].mxu0
  %662 = vmatprep.mubr.f32.mxu0 0.0
  %663 = vmatmul.mubr.f32.gmra.mrb[0].mxu0 %v423
  %v664 = vpop.f32.mrb[0].mxu0
  %v665 = vadd.f32 %v446, %v664
  %v666 = vpop.f32.mrb[0].mxu0
  %667 = vmatprep.mubr.f32.mxu0 0.0
  %668 = vmatmul.mubr.f32.gmra.mrb[0].mxu0 %v424
  %v669 = vpop.f32.mrb[0].mxu0
  %v670 = vadd.f32 %v446, %v669
  %v671 = vpop.f32.mrb[0].mxu0
  %672 = vdwg.mxu0
  %v673 = vtanh.pop %v515
  %v674 = vtanh.pop %v520
  %v675 = vtanh.pop %v525
  %v676 = vtanh.pop %v530
  %v677 = vtanh.pop %v535
  %v678 = vtanh.pop %v540
  %v679 = vtanh.pop %v545
  %v680 = vtanh.pop %v550
  %v681 = vtanh.pop %v555
  %v682 = vtanh.pop %v560
  %v683 = vtanh.pop %v565
  %v684 = vtanh.pop %v570
  %v685 = vtanh.pop %v575
  %v686 = vtanh.pop %v580
  %v687 = vtanh.pop %v585
  %v688 = vtanh.pop %v590
  %v689 = vtanh.pop %v595
  %v690 = vtanh.pop %v600
  %v691 = vtanh.pop %v605
  %v692 = vtanh.pop %v610
  %v693 = vtanh.pop %v615
  %v694 = vtanh.pop %v620
  %v695 = vtanh.pop %v625
  %v696 = vtanh.pop %v630
  %v697 = vtanh.pop %v635
  %v698 = vtanh.pop %v640
  %v699 = vtanh.pop %v645
  %v700 = vtanh.pop %v650
  %v701 = vtanh.pop %v655
  %v702 = vtanh.pop %v660
  %v703 = vtanh.pop %v665
  %v704 = vtanh.pop %v670
  %v705 = vld [vmem:[%s5] sm:$0xff]
  %v706 = vld [vmem:[%s5 + $0x8] sm:$0xff]
  %v707 = vld [vmem:[%s5 + $0x10] sm:$0xff]
  %v708 = vld [vmem:[%s5 + $0x18] sm:$0xff]
  %v709 = vld [vmem:[%s5 + $0x20] sm:$0xff]
  %v710 = vld [vmem:[%s5 + $0x28] sm:$0xff]
  %v711 = vld [vmem:[%s5 + $0x30] sm:$0xff]
  %v712 = vld [vmem:[%s5 + $0x38] sm:$0xff]
  %v713 = vld [vmem:[%s5 + $0x40] sm:$0xff]
  %v714 = vld [vmem:[%s5 + $0x48] sm:$0xff]
  %v715 = vld [vmem:[%s5 + $0x50] sm:$0xff]
  %v716 = vld [vmem:[%s5 + $0x58] sm:$0xff]
  %v717 = vld [vmem:[%s5 + $0x60] sm:$0xff]
  %v718 = vld [vmem:[%s5 + $0x68] sm:$0xff]
  %v719 = vld [vmem:[%s5 + $0x70] sm:$0xff]
  %v720 = vld [vmem:[%s5 + $0x78] sm:$0xff]
  %v721 = vld [vmem:[%s6] sm:$0x1]
  %v723 = vlaneseq
  %v724 = vshrl.u32 %v723, 7
  %v725 = vsub.s32 0, %v724
  %v726 = vrot.slane %v721, %v725
  %728 = vmatprep.subr.mxu0 0.0
  %729 = vmatpush1.msra.mxu0 %v705
  %730 = vmatprep.subr.mxu0 0.0
  %731 = vmatpush1.msra.mxu0 %v706
  %732 = vmatprep.subr.mxu0 0.0
  %733 = vmatpush1.msra.mxu0 %v707
  %734 = vmatprep.subr.mxu0 0.0
  %735 = vmatpush1.msra.mxu0 %v708
  %736 = vmatprep.subr.mxu0 0.0
  %737 = vmatpush1.msra.mxu0 %v709
  %738 = vmatprep.subr.mxu0 0.0
  %739 = vmatpush1.msra.mxu0 %v710
  %740 = vmatprep.subr.mxu0 0.0
  %741 = vmatpush1.msra.mxu0 %v711
  %742 = vmatprep.subr.mxu0 0.0
  %743 = vmatpush1.msra.mxu0 %v712
  %744 = vmatprep.subr.mxu0 0.0
  %745 = vmatpush1.msra.mxu0 %v713
  %746 = vmatprep.subr.mxu0 0.0
  %747 = vmatpush1.msra.mxu0 %v714
  %748 = vmatprep.subr.mxu0 0.0
  %749 = vmatpush1.msra.mxu0 %v715
  %750 = vmatprep.subr.mxu0 0.0
  %751 = vmatpush1.msra.mxu0 %v716
  %752 = vmatprep.subr.mxu0 0.0
  %753 = vmatpush1.msra.mxu0 %v717
  %754 = vmatprep.subr.mxu0 0.0
  %755 = vmatpush1.msra.mxu0 %v718
  %756 = vmatprep.subr.mxu0 0.0
  %757 = vmatpush1.msra.mxu0 %v719
  %758 = vmatprep.subr.mxu0 0.0
  %759 = vmatpush1.msra.mxu0 %v720
  %760 = vmatprep.subr.mxu0 0.0
  %761 = vmatpush1.msra.mxu0 0.0
  %762 = vmatprep.subr.mxu0 0.0
  %763 = vmatpush1.msra.mxu0 0.0
  %764 = vmatprep.subr.mxu0 0.0
  %765 = vmatpush1.msra.mxu0 0.0
  %766 = vmatprep.subr.mxu0 0.0
  %767 = vmatpush1.msra.mxu0 0.0
  %768 = vmatprep.subr.mxu0 0.0
  %769 = vmatpush1.msra.mxu0 0.0
  %770 = vmatprep.subr.mxu0 0.0
  %771 = vmatpush1.msra.mxu0 0.0
  %772 = vmatprep.subr.mxu0 0.0
  %773 = vmatpush1.msra.mxu0 0.0
  %774 = vmatprep.subr.mxu0 0.0
  %775 = vmatpush1.msra.mxu0 0.0
  %776 = vmatprep.subr.mxu0 0.0
  %777 = vmatpush1.msra.mxu0 0.0
  %778 = vmatprep.subr.mxu0 0.0
  %779 = vmatpush1.msra.mxu0 0.0
  %780 = vmatprep.subr.mxu0 0.0
  %781 = vmatpush1.msra.mxu0 0.0
  %782 = vmatprep.subr.mxu0 0.0
  %783 = vmatpush1.msra.mxu0 0.0
  %784 = vmatprep.subr.mxu0 0.0
  %785 = vmatpush1.msra.mxu0 0.0
  %786 = vmatprep.subr.mxu0 0.0
  %787 = vmatpush1.msra.mxu0 0.0
  %788 = vmatprep.subr.mxu0 0.0
  %789 = vmatpush1.msra.mxu0 0.0
  %790 = vmatprep.subr.mxu0 0.0
  %791 = vmatpush1.msra.mxu0 0.0
  %792 = vmatprep.mubr.f32.mxu0 0.0
  %793 = vmatmul.mubr.f32.gmra.mrb[0].mxu0 %v673
  %v794 = vpop.f32.mrb[0].mxu0
  %v795 = vadd.f32 %v726, %v794
  %v796 = vpop.f32.mrb[0].mxu0
  %797 = vmatprep.mubr.f32.mxu0 0.0
  %798 = vmatmul.mubr.f32.gmra.mrb[0].mxu0 %v674
  %v799 = vpop.f32.mrb[0].mxu0
  %v800 = vadd.f32 %v726, %v799
  %v801 = vpop.f32.mrb[0].mxu0
  %802 = vmatprep.mubr.f32.mxu0 0.0
  %803 = vmatmul.mubr.f32.gmra.mrb[0].mxu0 %v675
  %v804 = vpop.f32.mrb[0].mxu0
  %v805 = vadd.f32 %v726, %v804
  %v806 = vpop.f32.mrb[0].mxu0
  %807 = vmatprep.mubr.f32.mxu0 0.0
  %808 = vmatmul.mubr.f32.gmra.mrb[0].mxu0 %v676
  %v809 = vpop.f32.mrb[0].mxu0
  %v810 = vadd.f32 %v726, %v809
  %v811 = vpop.f32.mrb[0].mxu0
  %812 = vmatprep.mubr.f32.mxu0 0.0
  %813 = vmatmul.mubr.f32.gmra.mrb[0].mxu0 %v677
  %v814 = vpop.f32.mrb[0].mxu0
  %v815 = vadd.f32 %v726, %v814
  %v816 = vpop.f32.mrb[0].mxu0
  %817 = vmatprep.mubr.f32.mxu0 0.0
  %818 = vmatmul.mubr.f32.gmra.mrb[0].mxu0 %v678
  %v819 = vpop.f32.mrb[0].mxu0
  %v820 = vadd.f32 %v726, %v819
  %v821 = vpop.f32.mrb[0].mxu0
  %822 = vmatprep.mubr.f32.mxu0 0.0
  %823 = vmatmul.mubr.f32.gmra.mrb[0].mxu0 %v679
  %v824 = vpop.f32.mrb[0].mxu0
  %v825 = vadd.f32 %v726, %v824
  %v826 = vpop.f32.mrb[0].mxu0
  %827 = vmatprep.mubr.f32.mxu0 0.0
  %828 = vmatmul.mubr.f32.gmra.mrb[0].mxu0 %v680
  %v829 = vpop.f32.mrb[0].mxu0
  %v830 = vadd.f32 %v726, %v829
  %v831 = vpop.f32.mrb[0].mxu0
  %832 = vmatprep.mubr.f32.mxu0 0.0
  %833 = vmatmul.mubr.f32.gmra.mrb[0].mxu0 %v681
  %v834 = vpop.f32.mrb[0].mxu0
  %v835 = vadd.f32 %v726, %v834
  %v836 = vpop.f32.mrb[0].mxu0
  %837 = vmatprep.mubr.f32.mxu0 0.0
  %838 = vmatmul.mubr.f32.gmra.mrb[0].mxu0 %v682
  %v839 = vpop.f32.mrb[0].mxu0
  %v840 = vadd.f32 %v726, %v839
  %v841 = vpop.f32.mrb[0].mxu0
  %842 = vmatprep.mubr.f32.mxu0 0.0
  %843 = vmatmul.mubr.f32.gmra.mrb[0].mxu0 %v683
  %v844 = vpop.f32.mrb[0].mxu0
  %v845 = vadd.f32 %v726, %v844
  %v846 = vpop.f32.mrb[0].mxu0
  %847 = vmatprep.mubr.f32.mxu0 0.0
  %848 = vmatmul.mubr.f32.gmra.mrb[0].mxu0 %v684
  %v849 = vpop.f32.mrb[0].mxu0
  %v850 = vadd.f32 %v726, %v849
  %v851 = vpop.f32.mrb[0].mxu0
  %852 = vmatprep.mubr.f32.mxu0 0.0
  %853 = vmatmul.mubr.f32.gmra.mrb[0].mxu0 %v685
  %v854 = vpop.f32.mrb[0].mxu0
  %v855 = vadd.f32 %v726, %v854
  %v856 = vpop.f32.mrb[0].mxu0
  %857 = vmatprep.mubr.f32.mxu0 0.0
  %858 = vmatmul.mubr.f32.gmra.mrb[0].mxu0 %v686
  %v859 = vpop.f32.mrb[0].mxu0
  %v860 = vadd.f32 %v726, %v859
  %v861 = vpop.f32.mrb[0].mxu0
  %862 = vmatprep.mubr.f32.mxu0 0.0
  %863 = vmatmul.mubr.f32.gmra.mrb[0].mxu0 %v687
  %v864 = vpop.f32.mrb[0].mxu0
  %v865 = vadd.f32 %v726, %v864
  %v866 = vpop.f32.mrb[0].mxu0
  %867 = vmatprep.mubr.f32.mxu0 0.0
  %868 = vmatmul.mubr.f32.gmra.mrb[0].mxu0 %v688
  %v869 = vpop.f32.mrb[0].mxu0
  %v870 = vadd.f32 %v726, %v869
  %v871 = vpop.f32.mrb[0].mxu0
  %872 = vmatprep.mubr.f32.mxu0 0.0
  %873 = vmatmul.mubr.f32.gmra.mrb[0].mxu0 %v689
  %v874 = vpop.f32.mrb[0].mxu0
  %v875 = vadd.f32 %v726, %v874
  %v876 = vpop.f32.mrb[0].mxu0
  %877 = vmatprep.mubr.f32.mxu0 0.0
  %878 = vmatmul.mubr.f32.gmra.mrb[0].mxu0 %v690
  %v879 = vpop.f32.mrb[0].mxu0
  %v880 = vadd.f32 %v726, %v879
  %v881 = vpop.f32.mrb[0].mxu0
  %882 = vmatprep.mubr.f32.mxu0 0.0
  %883 = vmatmul.mubr.f32.gmra.mrb[0].mxu0 %v691
  %v884 = vpop.f32.mrb[0].mxu0
  %v885 = vadd.f32 %v726, %v884
  %v886 = vpop.f32.mrb[0].mxu0
  %887 = vmatprep.mubr.f32.mxu0 0.0
  %888 = vmatmul.mubr.f32.gmra.mrb[0].mxu0 %v692
  %v889 = vpop.f32.mrb[0].mxu0
  %v890 = vadd.f32 %v726, %v889
  %v891 = vpop.f32.mrb[0].mxu0
  %892 = vmatprep.mubr.f32.mxu0 0.0
  %893 = vmatmul.mubr.f32.gmra.mrb[0].mxu0 %v693
  %v894 = vpop.f32.mrb[0].mxu0
  %v895 = vadd.f32 %v726, %v894
  %v896 = vpop.f32.mrb[0].mxu0
  %897 = vmatprep.mubr.f32.mxu0 0.0
  %898 = vmatmul.mubr.f32.gmra.mrb[0].mxu0 %v694
  %v899 = vpop.f32.mrb[0].mxu0
  %v900 = vadd.f32 %v726, %v899
  %v901 = vpop.f32.mrb[0].mxu0
  %902 = vmatprep.mubr.f32.mxu0 0.0
  %903 = vmatmul.mubr.f32.gmra.mrb[0].mxu0 %v695
  %v904 = vpop.f32.mrb[0].mxu0
  %v905 = vadd.f32 %v726, %v904
  %v906 = vpop.f32.mrb[0].mxu0
  %907 = vmatprep.mubr.f32.mxu0 0.0
  %908 = vmatmul.mubr.f32.gmra.mrb[0].mxu0 %v696
  %v909 = vpop.f32.mrb[0].mxu0
  %v910 = vadd.f32 %v726, %v909
  %v911 = vpop.f32.mrb[0].mxu0
  %912 = vmatprep.mubr.f32.mxu0 0.0
  %913 = vmatmul.mubr.f32.gmra.mrb[0].mxu0 %v697
  %v914 = vpop.f32.mrb[0].mxu0
  %v915 = vadd.f32 %v726, %v914
  %v916 = vpop.f32.mrb[0].mxu0
  %917 = vmatprep.mubr.f32.mxu0 0.0
  %918 = vmatmul.mubr.f32.gmra.mrb[0].mxu0 %v698
  %v919 = vpop.f32.mrb[0].mxu0
  %v920 = vadd.f32 %v726, %v919
  %v921 = vpop.f32.mrb[0].mxu0
  %922 = vmatprep.mubr.f32.mxu0 0.0
  %923 = vmatmul.mubr.f32.gmra.mrb[0].mxu0 %v699
  %v924 = vpop.f32.mrb[0].mxu0
  %v925 = vadd.f32 %v726, %v924
  %v926 = vpop.f32.mrb[0].mxu0
  %927 = vmatprep.mubr.f32.mxu0 0.0
  %928 = vmatmul.mubr.f32.gmra.mrb[0].mxu0 %v700
  %v929 = vpop.f32.mrb[0].mxu0
  %v930 = vadd.f32 %v726, %v929
  %v931 = vpop.f32.mrb[0].mxu0
  %932 = vmatprep.mubr.f32.mxu0 0.0
  %933 = vmatmul.mubr.f32.gmra.mrb[0].mxu0 %v701
  %v934 = vpop.f32.mrb[0].mxu0
  %v935 = vadd.f32 %v726, %v934
  %v936 = vpop.f32.mrb[0].mxu0
  %937 = vmatprep.mubr.f32.mxu0 0.0
  %938 = vmatmul.mubr.f32.gmra.mrb[0].mxu0 %v702
  %v939 = vpop.f32.mrb[0].mxu0
  %v940 = vadd.f32 %v726, %v939
  %v941 = vpop.f32.mrb[0].mxu0
  %942 = vmatprep.mubr.f32.mxu0 0.0
  %943 = vmatmul.mubr.f32.gmra.mrb[0].mxu0 %v703
  %v944 = vpop.f32.mrb[0].mxu0
  %v945 = vadd.f32 %v726, %v944
  %v946 = vpop.f32.mrb[0].mxu0
  %947 = vmatprep.mubr.f32.mxu0 0.0
  %948 = vmatmul.mubr.f32.gmra.mrb[0].mxu0 %v704
  %v949 = vpop.f32.mrb[0].mxu0
  %v950 = vadd.f32 %v726, %v949
  %v951 = vpop.f32.mrb[0].mxu0
  %952 = vdwg.mxu0
  %vm953 = vcmask 80896
  %954 = vst.msk [vmem:[%s7] sm:$0xff] %vm953, %v795
  %955 = vst.msk [vmem:[%s7 + $0x8] sm:$0xff] %vm953, %v800
  %956 = vst.msk [vmem:[%s7 + $0x10] sm:$0xff] %vm953, %v805
  %957 = vst.msk [vmem:[%s7 + $0x18] sm:$0xff] %vm953, %v810
  %958 = vst.msk [vmem:[%s7 + $0x20] sm:$0xff] %vm953, %v815
  %959 = vst.msk [vmem:[%s7 + $0x28] sm:$0xff] %vm953, %v820
  %960 = vst.msk [vmem:[%s7 + $0x30] sm:$0xff] %vm953, %v825
  %961 = vst.msk [vmem:[%s7 + $0x38] sm:$0xff] %vm953, %v830
  %962 = vst.msk [vmem:[%s7 + $0x40] sm:$0xff] %vm953, %v835
  %963 = vst.msk [vmem:[%s7 + $0x48] sm:$0xff] %vm953, %v840
  %964 = vst.msk [vmem:[%s7 + $0x50] sm:$0xff] %vm953, %v845
  %965 = vst.msk [vmem:[%s7 + $0x58] sm:$0xff] %vm953, %v850
  %966 = vst.msk [vmem:[%s7 + $0x60] sm:$0xff] %vm953, %v855
  %967 = vst.msk [vmem:[%s7 + $0x68] sm:$0xff] %vm953, %v860
  %968 = vst.msk [vmem:[%s7 + $0x70] sm:$0xff] %vm953, %v865
  %969 = vst.msk [vmem:[%s7 + $0x78] sm:$0xff] %vm953, %v870
  %970 = vst.msk [vmem:[%s7 + $0x80] sm:$0xff] %vm953, %v875
  %971 = vst.msk [vmem:[%s7 + $0x88] sm:$0xff] %vm953, %v880
  %972 = vst.msk [vmem:[%s7 + $0x90] sm:$0xff] %vm953, %v885
  %973 = vst.msk [vmem:[%s7 + $0x98] sm:$0xff] %vm953, %v890
  %974 = vst.msk [vmem:[%s7 + $0xa0] sm:$0xff] %vm953, %v895
  %975 = vst.msk [vmem:[%s7 + $0xa8] sm:$0xff] %vm953, %v900
  %976 = vst.msk [vmem:[%s7 + $0xb0] sm:$0xff] %vm953, %v905
  %977 = vst.msk [vmem:[%s7 + $0xb8] sm:$0xff] %vm953, %v910
  %978 = vst.msk [vmem:[%s7 + $0xc0] sm:$0xff] %vm953, %v915
  %979 = vst.msk [vmem:[%s7 + $0xc8] sm:$0xff] %vm953, %v920
  %980 = vst.msk [vmem:[%s7 + $0xd0] sm:$0xff] %vm953, %v925
  %981 = vst.msk [vmem:[%s7 + $0xd8] sm:$0xff] %vm953, %v930
  %982 = vst.msk [vmem:[%s7 + $0xe0] sm:$0xff] %vm953, %v935
  %983 = vst.msk [vmem:[%s7 + $0xe8] sm:$0xff] %vm953, %v940
  %984 = vst.msk [vmem:[%s7 + $0xf0] sm:$0xff] %vm953, %v945
  %985 = vst.msk [vmem:[%s7 + $0xf8] sm:$0xff] %vm953, %v950
  // Predicated region
  $region30: #{decoder_subnet_forward.1} parent=0 // pred_check
    _
  $region31: #{decoder_subnet_forward.1} parent=0 // pred_check_branch
    %987 = sbr.rel (0) target = $region33
  $region32: #{decoder_subnet_forward.1} parent=0 // pred_region
    _
  $region33: #{decoder_subnet_forward.1} parent=0 // pred_fallthru
    _
  // Predicated region
  $region34: #{decoder_subnet_forward.1} parent=0 // pred_check
    _
  $region35: #{decoder_subnet_forward.1} parent=0 // pred_check_branch
    %989 = sbr.rel (0) target = $region37
  $region36: #{decoder_subnet_forward.1} parent=0 // pred_region
    _
  $region37: #{decoder_subnet_forward.1} parent=0 // pred_fallthru
    _

</llo_original>
